<compile_context>
chip_gen: v6e
topology: v6e:2x2x1
jax: 0.10.0
libtpu: 0.0.40
codegen_flags: <defaults>
</compile_context>

<pallas_src>
import functools

import jax
import jax.numpy as jnp
import numpy as np
from jax import lax
from jax.experimental import pallas as pl
from jax.experimental.pallas import tpu as pltpu


# --------------------------- rotation-matrix glue ---------------------------
# TODO(synk): RNG for the euler angles and the 3x3 matrix construction are tiny
# host/scalar work (torch.rand + 3x3 matmuls) -- kept as plain JAX glue; only
# the O(B*N*D) point transform runs in the Pallas kernel.
def _axis_angle_rotation(axis, angle):
    c = jnp.cos(angle)
    s = jnp.sin(angle)
    one = jnp.ones_like(angle)
    zero = jnp.zeros_like(angle)
    if axis == "X":
        flat = (one, zero, zero, zero, c, -s, zero, s, c)
    elif axis == "Y":
        flat = (c, zero, s, zero, one, zero, -s, zero, c)
    elif axis == "Z":
        flat = (c, -s, zero, s, c, zero, zero, zero, one)
    else:
        raise ValueError(f"bad axis {axis}")
    return jnp.stack(flat).reshape(3, 3)


def euler_angles_to_matrix(euler_angles, convention="XYZ"):
    mats = [_axis_angle_rotation(c, euler_angles[i]) for i, c in enumerate(convention)]
    return mats[0] @ mats[1] @ mats[2]


# ------------------------------- Pallas kernel -------------------------------
def _rotation_kernel(m_ref, pts_ref, out_ref, *, d):
    """Apply the folded block-diagonal transform to one tile of point rows.

    m_ref   : VMEM (FD, FD)  -- kron(I_FOLD, [[R^T,0],[0,I]]), grid-resident
    pts_ref : VMEM (TR, FD)  -- FOLD points packed per lane-dense row
    out_ref : VMEM (TR, FD)
    """
    x = pts_ref[...]                                       # native dtype (bf16 ok on MXU)
    y = jnp.dot(x, m_ref[...], preferred_element_type=jnp.float32)
    # Bit-exact pass-through of non-xyz features: rotated result only on xyz
    # lanes (lane % D < 3), raw input elsewhere.  A couple of VPU ops, fully
    # hidden in a mem-bound kernel.
    lane = lax.broadcasted_iota(jnp.int32, x.shape, dimension=1)
    out_ref[...] = jnp.where((lane % d) < 3, y.astype(out_ref.dtype), x)


def _largest_divisor_leq(n, cap):
    best = 1
    for f in range(1, min(n, cap) + 1):
        if n % f == 0:
            best = f
    return best


@jax.jit
def rotate_point_cloud_pallas(points, R):
    """points (B, N, D) with xyz in the first 3 features; R (3, 3) rotation."""
    B, N, D = points.shape
    assert D >= 3, "point cloud must carry xyz in the first 3 features"
    dtype = points.dtype
    itemsize = jnp.dtype(dtype).itemsize
    mat_dtype = jnp.float32 if dtype == jnp.float32 else dtype

    # Per-point transform: rotate first 3 features, identity on the rest
    # (the identity lanes are overridden bit-exactly in the kernel anyway).
    m = jnp.eye(D, dtype=jnp.float32).at[:3, :3].set(R.T.astype(jnp.float32))

    # ---- fold selection: lane-dense rows, fd <= 128 -------------------------
    tot = B * N
    cap = max(1, 128 // D)                       # fold*D <= 128
    fold = _largest_divisor_leq(tot, cap)
    if fold * D < min(96, cap * D):              # <75% lane utilization -> pad instead
        fold = cap
    tot_pad = -(-tot // fold) * fold
    rows, fd = tot_pad // fold, fold * D

    m_fold = jnp.kron(jnp.eye(fold, dtype=jnp.float32), m).astype(mat_dtype)

    flat = points.reshape(tot, D)
    if tot_pad != tot:                           # rare awkward-size path
        flat = jnp.pad(flat, ((0, tot_pad - tot), (0, 0)))
    flat = flat.reshape(rows, fd)                # contiguous -> free reshape (when unpadded)

    # ---- row-tile selection --------------------------------------------------
    # granule: sublane packing per dtype (f32->8, bf16->16, int8/fp8->32).
    granule = max(8, 32 // itemsize)
    max_tr = min(8192, max(granule, ((4 * 1024 * 1024) // (fd * itemsize)) // granule * granule))
    if rows <= granule:
        tr = rows                                # full-dim block (always legal)
    else:
        tr = -(-rows // 8)                       # aim for ~8 grid steps (v7x megacore)
        tr = max(granule, (tr // granule) * granule)
        tr = min(tr, max_tr)
        if tr >= rows:
            tr = rows

    kernel = functools.partial(_rotation_kernel, d=D)
    grid_spec = pltpu.PrefetchScalarGridSpec(
        num_scalar_prefetch=0,
        grid=(pl.cdiv(rows, tr),),
        in_specs=[
            pl.BlockSpec((fd, fd), lambda i: (0, 0)),   # transform matrix (resident)
            pl.BlockSpec((tr, fd), lambda i: (i, 0)),   # packed point rows
        ],
        out_specs=pl.BlockSpec((tr, fd), lambda i: (i, 0)),
    )
    out_flat = pl.pallas_call(
        kernel,
        out_shape=jax.ShapeDtypeStruct((rows, fd), dtype),
        grid_spec=grid_spec,
        compiler_params=pltpu.CompilerParams(
            dimension_semantics=("parallel",),
            vmem_limit_bytes=32 * 1024 * 1024,          # headroom over v5e's 16 MiB default
        ),
    )(m_fold, flat)

    out = out_flat.reshape(tot_pad, D)
    if tot_pad != tot:
        out = out[:tot]
    return out.reshape(B, N, D)


# ------------------------------ module wrapper -------------------------------
class PointCloudRotation:
    """JAX/Pallas equivalent of the PyTorch PointCloudRotation module.

    JAX is functional, so a new (rotated) array is returned instead of mutating
    points in place, and the RNG key is passed explicitly.
    """

    def __init__(self, dims=None):
        self.dims = [1] if dims is None else list(dims)

    def sample_rotation(self, key):
        angles = jnp.zeros(3, dtype=jnp.float32)
        keys = jax.random.split(key, len(self.dims))
        for d, k in zip(self.dims, keys):
            angles = angles.at[d].set(
                2.0 * jnp.pi * jax.random.uniform(k, dtype=jnp.float32) - jnp.pi
            )
        return euler_angles_to_matrix(angles, "XYZ")

    def __call__(self, points, key):
        R = self.sample_rotation(key)
        return rotate_point_cloud_pallas(points, R)


# ----------------- exact f32 numpy reference (correctness check) -------------
def _rotation_ref_np(points_np, R_np):
    out = np.array(points_np, dtype=np.float32)
    out[:, :, :3] = out[:, :, :3] @ np.asarray(R_np, dtype=np.float32).T
    return out


if __name__ == "__main__":
    key = jax.random.PRNGKey(0)
    k1, k2, k3, k4 = jax.random.split(key, 4)

    # --- case 1: default module (rotation about Y), f32, D = 6 features ------
    B, N, D = 2, 256, 6
    pts = jax.random.normal(k1, (B, N, D), dtype=jnp.float32)
    mod = PointCloudRotation(dims=[1])
    out = jax.block_until_ready(mod(pts, k2))
    assert out.shape == pts.shape and out.dtype == pts.dtype
    R = mod.sample_rotation(k2)                      # same key -> same rotation
    ref = _rotation_ref_np(np.asarray(pts), np.asarray(R))
    np.testing.assert_allclose(np.asarray(out[..., :3]), ref[..., :3], atol=1e-5, rtol=1e-5)
    np.testing.assert_array_equal(np.asarray(out[..., 3:]), np.asarray(pts[..., 3:]))  # bit-exact

    # --- case 2: rotation about all three axes, xyz-only cloud (D = 3) -------
    pts2 = jax.random.normal(k3, (2, 128, 3), dtype=jnp.float32)
    mod2 = PointCloudRotation(dims=[0, 1, 2])
    out2 = jax.block_until_ready(mod2(pts2, k2))
    R2 = mod2.sample_rotation(k2)
    ref2 = _rotation_ref_np(np.asarray(pts2), np.asarray(R2))
    np.testing.assert_allclose(np.asarray(out2), ref2, atol=1e-5, rtol=1e-5)

    # --- case 3: awkward point count (exercises the padding path) ------------
    pts3 = jax.random.normal(k4, (1, 333, 6), dtype=jnp.float32)
    mod3 = PointCloudRotation(dims=[0, 2])
    out3 = jax.block_until_ready(mod3(pts3, k2))
    R3 = mod3.sample_rotation(k2)
    ref3 = _rotation_ref_np(np.asarray(pts3), np.asarray(R3))
    np.testing.assert_allclose(np.asarray(out3[..., :3]), ref3[..., :3], atol=1e-5, rtol=1e-5)
    np.testing.assert_array_equal(np.asarray(out3[..., 3:]), np.asarray(pts3[..., 3:]))

    # --- case 4: bf16 point cloud (native bf16 MXU path, no f32 up-cast) -----
    pts4 = jax.random.normal(k1, (2, 512, 6), dtype=jnp.float32).astype(jnp.bfloat16)
    mod4 = PointCloudRotation(dims=[1])
    out4 = jax.block_until_ready(mod4(pts4, k3))
    assert out4.dtype == jnp.bfloat16
    R4 = mod4.sample_rotation(k3)
    ref4 = _rotation_ref_np(np.asarray(pts4.astype(jnp.float32)), np.asarray(R4))
    np.testing.assert_allclose(np.asarray(out4[..., :3].astype(jnp.float32)),
                               ref4[..., :3], atol=5e-2, rtol=5e-2)
    np.testing.assert_array_equal(np.asarray(out4[..., 3:].astype(jnp.float32)),
                                  np.asarray(pts4[..., 3:].astype(jnp.float32)))

    print("KERNEL_OK")
</pallas_src>

<mosaic_0001>
module attributes {stable_mosaic.version = 11 : i64} {
  func.func @_rotation_kernel(%arg0: i32, %arg1: memref<96x96xf32, #tpu.memory_space<vmem>>, %arg2: memref<8x96xf32, #tpu.memory_space<vmem>>, %arg3: memref<8x96xf32, #tpu.memory_space<vmem>>) attributes {dimension_semantics = [#tpu.dimension_semantics<parallel>], iteration_bounds = array<i64: 4>, scalar_prefetch = 0 : i64, scratch_operands = 0 : i64, tpu.core_type = #tpu.core_type<tc>, window_params = [{pipeline_mode = #tpu.pipeline_mode<synchronous>, transform_indices = @transform_0, window_bounds = array<i64: 96, 96>}, {transform_indices = @transform_1, window_bounds = array<i64: 8, 96>}, {transform_indices = @transform_2, window_bounds = array<i64: 8, 96>}]} {
    %c0 = arith.constant 0 : index
    %c0_0 = arith.constant 0 : index
    %0 = vector.load %arg2[%c0, %c0_0] : memref<8x96xf32, #tpu.memory_space<vmem>>, vector<8x96xf32>
    %c0_1 = arith.constant 0 : index
    %c0_2 = arith.constant 0 : index
    %1 = vector.load %arg1[%c0_1, %c0_2] : memref<96x96xf32, #tpu.memory_space<vmem>>, vector<96x96xf32>
    %cst = arith.constant dense<0.000000e+00> : vector<8x96xf32>
    %2 = tpu.matmul %0, %1, %cst {dimension_numbers = #tpu.dot_dimension_numbers<[1], [0], [0], [1], [0, 0, 1, 1], [], []>} : vector<8x96xf32>, vector<96x96xf32>, vector<8x96xf32> -> vector<8x96xf32>
    %3 = tpu.iota {dimensions = array<i32: 1>} : vector<8x96xi32>
    %c6_i32 = arith.constant 6 : i32
    %c0_i32 = arith.constant 0 : i32
    %4 = arith.cmpi eq, %c6_i32, %c0_i32 : i32
    %c1_i32 = arith.constant 1 : i32
    %5 = arith.select %4, %c1_i32, %c6_i32 : i32
    %6 = vector.broadcast %5 : i32 to vector<8x96xi32>
    %7 = arith.remsi %3, %6 : vector<8x96xi32>
    %c0_i32_3 = arith.constant 0 : i32
    %8 = vector.broadcast %c0_i32_3 : i32 to vector<8x96xi32>
    %9 = arith.cmpi ne, %7, %8 : vector<8x96xi32>
    %c0_i32_4 = arith.constant 0 : i32
    %10 = vector.broadcast %c0_i32_4 : i32 to vector<8x96xi32>
    %11 = arith.cmpi slt, %7, %10 : vector<8x96xi32>
    %c0_i32_5 = arith.constant 0 : i32
    %12 = arith.cmpi slt, %5, %c0_i32_5 : i32
    %13 = vector.broadcast %12 : i1 to vector<8x96xi1>
    %14 = vector.broadcast %13 : vector<8x96xi1> to vector<8x96xi1>
    %15 = arith.xori %11, %14 : vector<8x96xi1>
    %16 = arith.andi %15, %9 : vector<8x96xi1>
    %17 = vector.broadcast %5 : i32 to vector<8x96xi32>
    %18 = arith.addi %7, %17 : vector<8x96xi32>
    %19 = arith.select %16, %18, %7 : vector<8x96xi1>, vector<8x96xi32>
    %c3_i32 = arith.constant 3 : i32
    %20 = vector.broadcast %c3_i32 : i32 to vector<8x96xi32>
    %21 = arith.cmpi slt, %19, %20 : vector<8x96xi32>
    %22 = arith.select %21, %2, %0 : vector<8x96xi1>, vector<8x96xf32>
    %c0_6 = arith.constant 0 : index
    %c0_7 = arith.constant 0 : index
    %23 = vector.load %arg3[%c0_6, %c0_7] : memref<8x96xf32, #tpu.memory_space<vmem>>, vector<8x96xf32>
    tpu.vector_store %arg3[%c0_6, %c0_7], %22 {strides = array<i32>} : memref<8x96xf32, #tpu.memory_space<vmem>>, vector<8x96xf32>,
    return
  }
  func.func @transform_0(%arg0: i32) -> (i32, i32) {
    %c0_i32 = arith.constant 0 : i32
    %c0_i32_0 = arith.constant 0 : i32
    %c0_i32_1 = arith.constant 0 : i32
    return %c0_i32, %c0_i32_0 : i32, i32
  }
  func.func @transform_1(%arg0: i32) -> (i32, i32) {
    %c0_i32 = arith.constant 0 : i32
    %c0_i32_0 = arith.constant 0 : i32
    return %arg0, %c0_i32 : i32, i32
  }
  func.func @transform_2(%arg0: i32) -> (i32, i32) {
    %c0_i32 = arith.constant 0 : i32
    %c0_i32_0 = arith.constant 0 : i32
    return %arg0, %c0_i32 : i32, i32
  }
}

</mosaic_0001>

<llo_original>
// kernel: rotate_point_cloud_pallas.1
$region0: #{rotate_point_cloud_pallas.1}
  #allocation0 [shape = 'u32[]', space=smem, size = 0x4, offset = 0x4, fixed_abs, tag = 'smem constant byte address 0x4 - core index']
  #allocation1 [shape = 'u32[144,128]{1,0:T(1,128)}', space=vmem, size = 0x12000, scoped, tag = 'internal scratch']
  %s0 = inlined_call_operand.vmem [shape: f32[96,96], index: 0, kind: input, shape index: {}]
  %s1 = inlined_call_operand.vmem [shape: f32[32,96], index: 1, kind: input, shape index: {}]
  %s2 = inlined_call_operand.vmem [shape: f32[32,96], index: 2, kind: output, shape index: {}]
  %s3 = sld [smem:[#allocation0]]
  $region41: #{rotate_point_cloud_pallas.1} parent=0
    _
  %s5 = ssub.s32 1, %s3
  %s6 = scalar_select 0, %s5, %s3
  loop: start=0, step=1, limit=6
  $region2: #{rotate_point_cloud_pallas.1} parent=0 // loop_pre_header
    _
  $region3: #{rotate_point_cloud_pallas.1} parent=0 // loop_header
    %s8 = sphi 0, %s12
    %p9 = scmp.ge.s32.totalorder %s8, 6
    %s16 = sphi 0, %s16
    %s18 = sphi 0, %s16
    %s19 = sphi 0, %s18
    %s33 = sphi 0, %s19
    %s39 = sphi 0, %s41
    %s42 = sphi 0, %s39
    %s43 = sphi 0, %s42
    %s59 = sphi 0, %s43
    %s65 = sphi 0, %s67
    %s68 = sphi 0, %s65
    %s69 = sphi 0, %s68
    %s85 = sphi 0, %s69
  $region4: #{rotate_point_cloud_pallas.1} parent=0 // loop_header_branch
    %11 = sbr.rel (%p9) target = $region8
  $region5: #{rotate_point_cloud_pallas.1} parent=0 // loop_body
    %s13 = ssub.s32 %s8, 1
    %s14 = ssub.s32 %s8, 2
    %s15 = sadd.s32 %s8, 1
    %s17 = sadd.s32 %s16, 1
    %p20 = scmp.eq.s32.totalorder %s8, 3
    %p21 = scmp.ne.s32.totalorder %s16, %s18
    %p22 = scmp.eq.s32.totalorder %s8, 0
    %p23 = por %p21, %p22
    %p24 = scmp.ne.s32.totalorder %s16, %s18
    %p25 = scmp.eq.s32.totalorder %s13, 3
    %p26 = por %p24, %p25
    %p27 = scmp.ne.s32.totalorder %s18, %s19
    %p28 = scmp.eq.s32.totalorder %s13, 0
    %p29 = por %p27, %p28
    %p30 = scmp.ne.s32.totalorder %s18, %s19
    %p31 = scmp.eq.s32.totalorder %s14, 3
    %p32 = por %p30, %p31
    %p34 = scmp.ne.s32.totalorder %s19, %s33
    %p35 = scmp.eq.s32.totalorder %s14, 0
    %p36 = por %p34, %p35
    %s37 = ssub.s32 %s8, %s15
    %p38 = scmp.eq.s32.totalorder %s37, 0
    %s40 = sadd.s32 %s39, 1
    %s41 = scalar_select %p38, %s39, %s40
    %p44 = pneg %p38
    %p45 = scmp.eq.s32.totalorder %s8, 3
    %p46 = por %p44, %p45
    %p47 = scmp.ne.s32.totalorder %s39, %s42
    %p48 = scmp.eq.s32.totalorder %s8, 0
    %p49 = por %p47, %p48
    %p50 = scmp.ne.s32.totalorder %s39, %s42
    %p51 = scmp.eq.s32.totalorder %s13, 3
    %p52 = por %p50, %p51
    %p53 = scmp.ne.s32.totalorder %s42, %s43
    %p54 = scmp.eq.s32.totalorder %s13, 0
    %p55 = por %p53, %p54
    %p56 = scmp.ne.s32.totalorder %s42, %s43
    %p57 = scmp.eq.s32.totalorder %s14, 3
    %p58 = por %p56, %p57
    %p60 = scmp.ne.s32.totalorder %s43, %s59
    %p61 = scmp.eq.s32.totalorder %s14, 0
    %p62 = por %p60, %p61
    %s63 = ssub.s32 %s8, %s15
    %p64 = scmp.eq.s32.totalorder %s63, 0
    %s66 = sadd.s32 %s65, 1
    %s67 = scalar_select %p64, %s65, %s66
    %p70 = pneg %p64
    %p71 = scmp.eq.s32.totalorder %s8, 3
    %p72 = por %p70, %p71
    %p73 = scmp.ne.s32.totalorder %s65, %s68
    %p74 = scmp.eq.s32.totalorder %s8, 0
    %p75 = por %p73, %p74
    %p76 = scmp.ne.s32.totalorder %s65, %s68
    %p77 = scmp.eq.s32.totalorder %s13, 3
    %p78 = por %p76, %p77
    %p79 = scmp.ne.s32.totalorder %s68, %s69
    %p80 = scmp.eq.s32.totalorder %s13, 0
    %p81 = por %p79, %p80
    %p82 = scmp.ne.s32.totalorder %s68, %s69
    %p83 = scmp.eq.s32.totalorder %s14, 3
    %p84 = por %p82, %p83
    %p86 = scmp.ne.s32.totalorder %s69, %s85
    %p87 = scmp.eq.s32.totalorder %s14, 0
    %p88 = por %p86, %p87
    %p89 = scmp.le.s32.totalorder 1, %s8
    %p90 = scmp.lt.s32.totalorder %s8, 5
    %p91 = pnand %p89, %p90
    %p92 = pneg %p91
    // Predicated region
    $region9: #{rotate_point_cloud_pallas.1} parent=5 // pred_check
      _
    $region10: #{rotate_point_cloud_pallas.1} parent=5 // pred_check_branch
      %94 = sbr.rel (%p91) target = $region12
    $region11: #{rotate_point_cloud_pallas.1} parent=5 // pred_region
      %s95 = ssub.s32 %s8, 1
      // Predicated region
      $region13: #{rotate_point_cloud_pallas.1} parent=11 // pred_check
        %p96 = pneg %p29
      $region14: #{rotate_point_cloud_pallas.1} parent=11 // pred_check_branch
        %98 = sbr.rel (%p96) target = $region16
      $region15: #{rotate_point_cloud_pallas.1} parent=11 // pred_region
        _
      $region16: #{rotate_point_cloud_pallas.1} parent=11 // pred_fallthru
        _
    $region12: #{rotate_point_cloud_pallas.1} parent=5 // pred_fallthru
      _
    %p99 = scmp.lt.s32.totalorder %s8, 4
    // Predicated region
    $region17: #{rotate_point_cloud_pallas.1} parent=5 // pred_check
      %p100 = pneg %p99
    $region18: #{rotate_point_cloud_pallas.1} parent=5 // pred_check_branch
      %102 = sbr.rel (%p100) target = $region20
    $region19: #{rotate_point_cloud_pallas.1} parent=5 // pred_region
      // Predicated region
      $region21: #{rotate_point_cloud_pallas.1} parent=19 // pred_check
        %p103 = pneg %p49
      $region22: #{rotate_point_cloud_pallas.1} parent=19 // pred_check_branch
        %105 = sbr.rel (%p103) target = $region24
      $region23: #{rotate_point_cloud_pallas.1} parent=19 // pred_region
        %p106 = scmp.lt.s32.totalorder %s8, 3
        %s107 = scalar_select %p106, %s8, 3
        %s108 = smul.addr %s107, 8
        %s109 = scalar_lea.vmem %s1, %s108
      $region24: #{rotate_point_cloud_pallas.1} parent=19 // pred_fallthru
        _
    $region20: #{rotate_point_cloud_pallas.1} parent=5 // pred_fallthru
      _
    %p110 = scmp.le.s32.totalorder 1, %s8
    %p111 = scmp.lt.s32.totalorder %s8, 5
    %p112 = pnand %p110, %p111
    %p113 = pneg %p112
    // Predicated region
    $region25: #{rotate_point_cloud_pallas.1} parent=5 // pred_check
      _
    $region26: #{rotate_point_cloud_pallas.1} parent=5 // pred_check_branch
      %115 = sbr.rel (%p112) target = $region28
    $region27: #{rotate_point_cloud_pallas.1} parent=5 // pred_region
      %s116 = ssub.s32 %s8, 1
      %p117 = pneg %p29
      %p118 = pneg %p26
      %p119 = scmp.lt.s32.totalorder %s13, 3
      %s120 = scalar_select %p119, %s13, 3
      %s121 = smul.addr %s120, 8
      %s122 = scalar_lea.vmem %s1, %s121
      %p123 = pneg %p55
      %p124 = pneg %p52
      %p125 = pneg %p81
      %p126 = pneg %p78
      %p127 = scmp.lt.s32.totalorder %s13, 3
      %s128 = scalar_select %p127, %s13, 3
      %s129 = smul.addr %s128, 8
      %s130 = scalar_lea.vmem %s2, %s129
      %p131 = scmp.lt.s32.totalorder %s13, 3
      %s132 = scalar_select %p131, %s13, 3
      %s133 = smul.addr %s132, 8
      %s134 = scalar_lea.vmem %s1, %s133
      %p135 = scmp.lt.s32.totalorder %s13, 3
      %s136 = scalar_select %p135, %s13, 3
      %s137 = smul.addr %s136, 8
      %s138 = scalar_lea.vmem %s2, %s137
      %v139 = vld [vmem:[%s134] sm:$0xff]
      %v140 = vld [vmem:[%s0] sm:$0xff]
      %v141 = vld [vmem:[%s0 + $0x8] sm:$0xff]
      %v142 = vld [vmem:[%s0 + $0x10] sm:$0xff]
      %v143 = vld [vmem:[%s0 + $0x18] sm:$0xff]
      %v144 = vld [vmem:[%s0 + $0x20] sm:$0xff]
      %v145 = vld [vmem:[%s0 + $0x28] sm:$0xff]
      %v146 = vld [vmem:[%s0 + $0x30] sm:$0xff]
      %v147 = vld [vmem:[%s0 + $0x38] sm:$0xff]
      %v148 = vld [vmem:[%s0 + $0x40] sm:$0xff]
      %v149 = vld [vmem:[%s0 + $0x48] sm:$0xff]
      %v150 = vld [vmem:[%s0 + $0x50] sm:$0xff]
      %v151 = vld [vmem:[%s0 + $0x58] sm:$0xff]
      %vm152 = vcmask 785408
      %v154 = vsel %vm152, %v139, 0
      %156 = vmatprep.subr.mxu0 0.0
      %157 = vmatpush1.msra.mxu0 0.0
      %158 = vmatprep.subr.mxu0 0.0
      %159 = vmatpush1.msra.mxu0 0.0
      %160 = vmatprep.subr.mxu0 0.0
      %161 = vmatpush1.msra.mxu0 0.0
      %162 = vmatprep.subr.mxu0 0.0
      %163 = vmatpush1.msra.mxu0 0.0
      %164 = vmatprep.subr.mxu0 0.0
      %165 = vmatpush1.msra.mxu0 %v151
      %166 = vmatprep.subr.mxu0 0.0
      %167 = vmatpush1.msra.mxu0 %v150
      %168 = vmatprep.subr.mxu0 0.0
      %169 = vmatpush1.msra.mxu0 %v149
      %170 = vmatprep.subr.mxu0 0.0
      %171 = vmatpush1.msra.mxu0 %v148
      %172 = vmatprep.subr.mxu0 0.0
      %173 = vmatpush1.msra.mxu0 %v147
      %174 = vmatprep.subr.mxu0 0.0
      %175 = vmatpush1.msra.mxu0 %v146
      %176 = vmatprep.subr.mxu0 0.0
      %177 = vmatpush1.msra.mxu0 %v145
      %178 = vmatprep.subr.mxu0 0.0
      %179 = vmatpush1.msra.mxu0 %v144
      %180 = vmatprep.subr.mxu0 0.0
      %181 = vmatpush1.msra.mxu0 %v143
      %182 = vmatprep.subr.mxu0 0.0
      %183 = vmatpush1.msra.mxu0 %v142
      %184 = vmatprep.subr.mxu0 0.0
      %185 = vmatpush1.msra.mxu0 %v141
      %186 = vmatprep.subr.mxu0 0.0
      %187 = vmatpush1.msra.mxu0 %v140
      %188 = vmatprep.subr.mxu0 0.0
      %189 = vmatpush2.msra.mxu0 0.0
      %190 = vmatprep.subr.mxu0 0.0
      %191 = vmatpush2.msra.mxu0 0.0
      %192 = vmatprep.subr.mxu0 0.0
      %193 = vmatpush2.msra.mxu0 0.0
      %194 = vmatprep.subr.mxu0 0.0
      %195 = vmatpush2.msra.mxu0 0.0
      %196 = vmatprep.subr.mxu0 0.0
      %197 = vmatpush2.msra.mxu0 0.0
      %198 = vmatprep.subr.mxu0 0.0
      %199 = vmatpush2.msra.mxu0 0.0
      %200 = vmatprep.subr.mxu0 0.0
      %201 = vmatpush2.msra.mxu0 0.0
      %202 = vmatprep.subr.mxu0 0.0
      %203 = vmatpush2.msra.mxu0 0.0
      %204 = vmatprep.subr.mxu0 0.0
      %205 = vmatpush2.msra.mxu0 0.0
      %206 = vmatprep.subr.mxu0 0.0
      %207 = vmatpush2.msra.mxu0 0.0
      %208 = vmatprep.subr.mxu0 0.0
      %209 = vmatpush2.msra.mxu0 0.0
      %210 = vmatprep.subr.mxu0 0.0
      %211 = vmatpush2.msra.mxu0 0.0
      %212 = vmatprep.subr.mxu0 0.0
      %213 = vmatpush2.msra.mxu0 0.0
      %214 = vmatprep.subr.mxu0 0.0
      %215 = vmatpush2.msra.mxu0 0.0
      %216 = vmatprep.subr.mxu0 0.0
      %217 = vmatpush2.msra.mxu0 0.0
      %218 = vmatprep.subr.mxu0 0.0
      %219 = vmatpush2.msra.mxu0 0.0
      %220 = vmatprep.mubr.f32.mxu0 0.0
      %221 = vmatmul.mubr.f32.gmra.mxu0 %v154
      %v222 = vpop.f32.mrf.mxu0
      %v223 = vadd.f32 0.0, %v222
      %v224 = vpop.f32.mrf.mxu0
      %225 = vdwg.mxu0
      %v226 = vlaneseq
      %v227 = vand.u32 %v226, 127
      %vm228 = vcmp.lt.s32.totalorder %v227, 0
      %v229 = vsub.s32 0, %v227
      %v230 = vsel %vm228, %v229, %v227
      %v231 = vmul.u32.u64.compose %v230, 2863311531
      %v232 = vextract.low.u32 %v231
      %v233 = vextract.high.u32 %v231
      %v234 = vshrl.u32 %v233, 2
      %v235 = vmul.u32 %v234, 6
      %v236 = vsub.s32 %v230, %v235
      %v237 = vsub.s32 0, %v236
      %v238 = vsel %vm228, %v237, %v236
      %vm239 = vcmp.ne.s32.totalorder %v238, 0
      %vm240 = vcmp.lt.s32.totalorder %v238, 0
      %vm241 = vmand %vm240, %vm239
      %v242 = vadd.s32 %v238, 6
      %v243 = vsel %vm241, %v242, %v238
      %vm244 = vcmp.lt.s32.totalorder %v243, 3
      %v245 = vsel %vm244, %v223, %v139
      %246 = vst.msk [vmem:[%s138] sm:$0xff] %vm152, %v245
      %p247 = scmp.lt.s32.totalorder %s13, 3
      %s248 = scalar_select %p247, %s13, 3
      %s249 = smul.addr %s248, 8
      %s250 = scalar_lea.vmem %s2, %s249
      // Predicated region
      $region29: #{rotate_point_cloud_pallas.1} parent=27 // pred_check
        %p251 = pneg %p78
      $region30: #{rotate_point_cloud_pallas.1} parent=27 // pred_check_branch
        %253 = sbr.rel (%p251) target = $region32
      $region31: #{rotate_point_cloud_pallas.1} parent=27 // pred_region
        _
      $region32: #{rotate_point_cloud_pallas.1} parent=27 // pred_fallthru
        _
    $region28: #{rotate_point_cloud_pallas.1} parent=5 // pred_fallthru
      _
    %p254 = scmp.le.s32.totalorder 2, %s8
    // Predicated region
    $region33: #{rotate_point_cloud_pallas.1} parent=5 // pred_check
      %p255 = pneg %p254
    $region34: #{rotate_point_cloud_pallas.1} parent=5 // pred_check_branch
      %257 = sbr.rel (%p255) target = $region36
    $region35: #{rotate_point_cloud_pallas.1} parent=5 // pred_region
      %s258 = ssub.s32 %s8, 2
      // Predicated region
      $region37: #{rotate_point_cloud_pallas.1} parent=35 // pred_check
        %p259 = pneg %p84
      $region38: #{rotate_point_cloud_pallas.1} parent=35 // pred_check_branch
        %261 = sbr.rel (%p259) target = $region40
      $region39: #{rotate_point_cloud_pallas.1} parent=35 // pred_region
        %p262 = scmp.lt.s32.totalorder %s14, 3
        %s263 = scalar_select %p262, %s14, 3
        %s264 = smul.addr %s263, 8
        %s265 = scalar_lea.vmem %s2, %s264
      $region40: #{rotate_point_cloud_pallas.1} parent=35 // pred_fallthru
        _
    $region36: #{rotate_point_cloud_pallas.1} parent=5 // pred_fallthru
      _
  $region6: #{rotate_point_cloud_pallas.1} parent=0 // loop_footer
    %s12 = sadd.s32 1, %s8
  $region7: #{rotate_point_cloud_pallas.1} parent=0 // loop_footer_branch
    %7 = sbr.rel target = $region3
  $region8: #{rotate_point_cloud_pallas.1} parent=0 // loop_exit
    _

</llo_original>
